<compile_context>
chip_gen: v5e
topology: v5e:2x2
jax: 0.10.0
libtpu: 0.0.40
codegen_flags: <defaults>
</compile_context>

<pallas_src>
import numpy as np
import jax
import jax.numpy as jnp
from jax.experimental import pallas as pl
from jax.experimental.pallas import tpu as pltpu

FEATURE = 8                      # ValueChoice([5, 6, 7, 8, 9, 10]) -> 8
OC, KH, KW = 3, 3, 3             # Conv2d(1, 3, kernel_size=3)
H, W = 4, 5                      # spatial size so flatten gives 18 features
OH, OW = H - KH + 1, W - KW + 1  # 2, 3
P = OH * OW                      # 6 output positions per channel
HW = H * W                       # 20 input pixels per example
FLAT = OC * P                    # 18 (matches nn.Linear(18, feature))
LANE = 128                       # lane width; out blocks kept lane-aligned
MAX_TILE_B = 32768               # 2.5 MiB x tile; fits v5e/v6e/v7x VMEM budgets


def forward_kernel(x_ref, wc_ref, bc_ref, w12_ref, b12_ref, ot_ref):
    # x_ref:   [tile_b, 20]  flattened input rows
    # wc_ref:  [20, 18]      conv folded into a direct matmul (C,H,W flatten order)
    # bc_ref:  [1, 18]       conv bias in flatten order
    # w12_ref: [18, 2]       fused fc1 @ fc2
    # b12_ref: [1, 2]        fused bias (b1 @ w2 + b2)
    # ot_ref:  [2, tile_b]   lane-dense (transposed) output block
    x = x_ref[...]
    h = jnp.dot(x, wc_ref[...], preferred_element_type=jnp.float32) + bc_ref[...]
    h = jnp.maximum(h, 0.0)  # LayerChoice -> nn.ReLU()
    o = jnp.dot(h, w12_ref[...], preferred_element_type=jnp.float32) + b12_ref[...]
    ot_ref[...] = o.T        # relayout rides the XLU slot; store is unmasked/lane-dense


def _round_up(n, m):
    return ((n + m - 1) // m) * m


def _conv_as_matmul(conv_w):
    """Embed Conv2d(1->3, k=3, valid) into W20 [H*W, OC*P] such that
    x.reshape(B, H*W) @ W20 == conv(x).view(B, -1) (PyTorch C,H,W flatten order)."""
    rows, cols = [], []
    for c in range(OC):
        for p in range(P):
            i, j = divmod(p, OW)
            for r in range(KH):
                for s in range(KW):
                    rows.append((i + r) * W + (j + s))
                    cols.append(c * P + p)
    rows = np.asarray(rows)
    cols = np.asarray(cols)
    vals = jnp.broadcast_to(
        conv_w.reshape(OC, 1, KH * KW), (OC, P, KH * KW)
    ).reshape(-1)
    return jnp.zeros((HW, FLAT), jnp.float32).at[rows, cols].add(vals)


def model_space_forward_lane_dense(x_nchw, params):
    """Kernel-native lane-dense output of shape [2, B]."""
    B, C, h, w = x_nchw.shape
    assert C == 1 and h == H and w == W, "view(-1, 18) requires [B, 1, 4, 5] input"

    # ---- glue (weight-only / free reshape, no extra pass over x) ----
    x_flat = x_nchw.reshape(B, HW).astype(jnp.float32)            # [B, 20]
    wc = _conv_as_matmul(params["conv_w"])                         # [20, 18]
    bc = jnp.repeat(params["conv_b"], P)[None, :]                  # [1, 18] c-major
    w12 = params["w1"] @ params["w2"]                              # [18, 2] fused fc
    b12 = (params["b1"] @ params["w2"] + params["b2"])[None, :]    # [1, 2]

    # ---- batch tiling: >= 2 tiles when possible (v7x megacore), lane-aligned,
    #      capped for VMEM; NO padding of x -- ragged last block is masked. ----
    tile_b = min(MAX_TILE_B, max(LANE, _round_up(pl.cdiv(B, 2), LANE)))
    n_tiles = pl.cdiv(B, tile_b)

    return pl.pallas_call(
        forward_kernel,
        out_shape=jax.ShapeDtypeStruct((2, B), jnp.float32),
        grid=(n_tiles,),
        in_specs=[
            pl.BlockSpec((tile_b, HW), lambda i: (i, 0)),   # only tiled/pipelined operand
            pl.BlockSpec((HW, FLAT), lambda i: (0, 0)),     # weights stay VMEM-resident
            pl.BlockSpec((1, FLAT), lambda i: (0, 0)),
            pl.BlockSpec((FLAT, 2), lambda i: (0, 0)),
            pl.BlockSpec((1, 2), lambda i: (0, 0)),
        ],
        out_specs=pl.BlockSpec((2, tile_b), lambda i: (0, i)),
        compiler_params=pltpu.CompilerParams(
            dimension_semantics=("parallel",),               # megacore-shardable batch
            vmem_limit_bytes=32 * 1024 * 1024,
        ),
    )(x_flat, wc, bc, w12, b12)


def model_space_forward(x_nchw, params):
    """Module-semantics output [B, 2]: tiny downstream transpose of the [2, B] kernel output."""
    return model_space_forward_lane_dense(x_nchw, params).T


def reference_forward(x_nchw, params):
    """Pure-JAX reference of the PyTorch forward (ReLU choice, feature=8)."""
    conv = jax.lax.conv_general_dilated(
        x_nchw, params["conv_w"], window_strides=(1, 1), padding="VALID",
        dimension_numbers=("NCHW", "OIHW", "NCHW"))
    conv = conv + params["conv_b"][None, :, None, None]
    act = jnp.maximum(conv, 0.0)
    flat = act.reshape(-1, FLAT)
    hid = flat @ params["w1"] + params["b1"]
    return hid @ params["w2"] + params["b2"]


def init_params(key):
    k1, k2, k3, k4, k5, k6 = jax.random.split(key, 6)
    return {
        "conv_w": jax.random.normal(k1, (OC, 1, KH, KW), jnp.float32) * 0.3,  # Conv2d(1, 3, 3)
        "conv_b": jax.random.normal(k2, (OC,), jnp.float32) * 0.1,
        "w1": jax.random.normal(k3, (FLAT, FEATURE), jnp.float32) * 0.2,      # Linear(18, feature)
        "b1": jax.random.normal(k4, (FEATURE,), jnp.float32) * 0.1,
        "w2": jax.random.normal(k5, (FEATURE, 2), jnp.float32) * 0.2,         # Linear(feature, 2)
        "b2": jax.random.normal(k6, (2,), jnp.float32) * 0.1,
    }


if __name__ == "__main__":
    key = jax.random.PRNGKey(0)
    pkey, xkey = jax.random.split(key)
    params = init_params(pkey)

    # Input consistent with the module: [B, 1, 4, 5] -> conv -> [B, 3, 2, 3] -> view(-1, 18)
    x = jax.random.normal(xkey, (2, 1, H, W), jnp.float32)

    out = jax.block_until_ready(model_space_forward(x, params))
    ref = jax.block_until_ready(reference_forward(x, params))

    assert out.shape == (2, 2)
    assert jnp.allclose(out, ref, atol=1e-5, rtol=1e-5), (out, ref)

    print("KERNEL_OK")
</pallas_src>

<mosaic_0001>
module attributes {stable_mosaic.version = 11 : i64} {
  func.func @forward_kernel(%arg0: i32, %arg1: memref<128x20xf32, #tpu.memory_space<vmem>>, %arg2: memref<20x18xf32, #tpu.memory_space<vmem>>, %arg3: memref<1x18xf32, #tpu.memory_space<vmem>>, %arg4: memref<18x2xf32, #tpu.memory_space<vmem>>, %arg5: memref<1x2xf32, #tpu.memory_space<vmem>>, %arg6: memref<2x128xf32, #tpu.memory_space<vmem>>) attributes {dimension_semantics = [#tpu.dimension_semantics<parallel>], iteration_bounds = array<i64: 1>, scalar_prefetch = 0 : i64, scratch_operands = 0 : i64, tpu.core_type = #tpu.core_type<tc>, window_params = [{transform_indices = @transform_0, window_bounds = array<i64: 128, 20>}, {pipeline_mode = #tpu.pipeline_mode<synchronous>, transform_indices = @transform_1, window_bounds = array<i64: 20, 18>}, {pipeline_mode = #tpu.pipeline_mode<synchronous>, transform_indices = @transform_2, window_bounds = array<i64: 1, 18>}, {pipeline_mode = #tpu.pipeline_mode<synchronous>, transform_indices = @transform_3, window_bounds = array<i64: 18, 2>}, {pipeline_mode = #tpu.pipeline_mode<synchronous>, transform_indices = @transform_4, window_bounds = array<i64: 1, 2>}, {transform_indices = @transform_5, window_bounds = array<i64: 2, 128>}]} {
    %c0 = arith.constant 0 : index
    %c0_0 = arith.constant 0 : index
    %0 = vector.load %arg1[%c0, %c0_0] : memref<128x20xf32, #tpu.memory_space<vmem>>, vector<128x20xf32>
    %c0_1 = arith.constant 0 : index
    %c0_2 = arith.constant 0 : index
    %1 = vector.load %arg2[%c0_1, %c0_2] : memref<20x18xf32, #tpu.memory_space<vmem>>, vector<20x18xf32>
    %cst = arith.constant dense<0.000000e+00> : vector<128x18xf32>
    %2 = tpu.matmul %0, %1, %cst {dimension_numbers = #tpu.dot_dimension_numbers<[1], [0], [0], [1], [0, 0, 1, 1], [], []>} : vector<128x20xf32>, vector<20x18xf32>, vector<128x18xf32> -> vector<128x18xf32>
    %c0_3 = arith.constant 0 : index
    %c0_4 = arith.constant 0 : index
    %3 = vector.load %arg3[%c0_3, %c0_4] : memref<1x18xf32, #tpu.memory_space<vmem>>, vector<1x18xf32>
    %4 = vector.broadcast %3 : vector<1x18xf32> to vector<128x18xf32>
    %5 = arith.addf %2, %4 : vector<128x18xf32>
    %cst_5 = arith.constant 0.000000e+00 : f32
    %6 = vector.broadcast %cst_5 : f32 to vector<128x18xf32>
    %7 = arith.maximumf %5, %6 : vector<128x18xf32>
    %c0_6 = arith.constant 0 : index
    %c0_7 = arith.constant 0 : index
    %8 = vector.load %arg4[%c0_6, %c0_7] : memref<18x2xf32, #tpu.memory_space<vmem>>, vector<18x2xf32>
    %cst_8 = arith.constant dense<0.000000e+00> : vector<128x2xf32>
    %9 = tpu.matmul %7, %8, %cst_8 {dimension_numbers = #tpu.dot_dimension_numbers<[1], [0], [0], [1], [0, 0, 1, 1], [], []>} : vector<128x18xf32>, vector<18x2xf32>, vector<128x2xf32> -> vector<128x2xf32>
    %c0_9 = arith.constant 0 : index
    %c0_10 = arith.constant 0 : index
    %10 = vector.load %arg5[%c0_9, %c0_10] : memref<1x2xf32, #tpu.memory_space<vmem>>, vector<1x2xf32>
    %11 = vector.broadcast %10 : vector<1x2xf32> to vector<128x2xf32>
    %12 = arith.addf %9, %11 : vector<128x2xf32>
    %13 = tpu.transpose %12, [1, 0] : vector<128x2xf32> -> vector<2x128xf32>
    %c0_11 = arith.constant 0 : index
    %c0_12 = arith.constant 0 : index
    %14 = vector.load %arg6[%c0_11, %c0_12] : memref<2x128xf32, #tpu.memory_space<vmem>>, vector<2x128xf32>
    tpu.vector_store %arg6[%c0_11, %c0_12], %13 {strides = array<i32>} : memref<2x128xf32, #tpu.memory_space<vmem>>, vector<2x128xf32>,
    return
  }
  func.func @transform_0(%arg0: i32) -> (i32, i32) {
    %c0_i32 = arith.constant 0 : i32
    %c0_i32_0 = arith.constant 0 : i32
    return %arg0, %c0_i32 : i32, i32
  }
  func.func @transform_1(%arg0: i32) -> (i32, i32) {
    %c0_i32 = arith.constant 0 : i32
    %c0_i32_0 = arith.constant 0 : i32
    %c0_i32_1 = arith.constant 0 : i32
    return %c0_i32, %c0_i32_0 : i32, i32
  }
  func.func @transform_2(%arg0: i32) -> (i32, i32) {
    %c0_i32 = arith.constant 0 : i32
    %c0_i32_0 = arith.constant 0 : i32
    %c0_i32_1 = arith.constant 0 : i32
    return %c0_i32, %c0_i32_0 : i32, i32
  }
  func.func @transform_3(%arg0: i32) -> (i32, i32) {
    %c0_i32 = arith.constant 0 : i32
    %c0_i32_0 = arith.constant 0 : i32
    %c0_i32_1 = arith.constant 0 : i32
    return %c0_i32, %c0_i32_0 : i32, i32
  }
  func.func @transform_4(%arg0: i32) -> (i32, i32) {
    %c0_i32 = arith.constant 0 : i32
    %c0_i32_0 = arith.constant 0 : i32
    %c0_i32_1 = arith.constant 0 : i32
    return %c0_i32, %c0_i32_0 : i32, i32
  }
  func.func @transform_5(%arg0: i32) -> (i32, i32) {
    %c0_i32 = arith.constant 0 : i32
    %c0_i32_0 = arith.constant 0 : i32
    return %c0_i32, %arg0 : i32, i32
  }
}

</mosaic_0001>

<llo_original>
// kernel: tpu_custom_call.1
$region0: #{tpu_custom_call.1}
  #allocation0 [shape = 'u32[]', space=smem, size = 0x4, offset = 0x4, fixed_abs, tag = 'smem constant byte address 0x4 - core index']
  #allocation1 [shape = 'u32[72,128]{1,0:T(1,128)}', space=vmem, size = 0x9000, scoped, tag = 'internal scratch']
  %s0 = inlined_call_operand.vmem [shape: f32[2,20], index: 0, kind: input, shape index: {}]
  %s1 = inlined_call_operand.vmem [shape: f32[20,18], index: 1, kind: input, shape index: {}]
  %s2 = inlined_call_operand.hbm [shape: f32[1,18], index: 2, kind: input, shape index: {}]
  %s3 = inlined_call_operand.vmem [shape: f32[18,2], index: 3, kind: input, shape index: {}]
  %s4 = inlined_call_operand.vmem [shape: f32[1,2], index: 4, kind: input, shape index: {}]
  %s5 = inlined_call_operand.hbm [shape: f32[2,2], index: 5, kind: output, shape index: {}]
  %s6 = sld [smem:[#allocation0]]
  $region34: #{tpu_custom_call.1} parent=0
    _
  %s8 = ssub.s32 1, %s6
  %s9 = scalar_select 0, %s8, %s6
  $region1: #{tpu_custom_call.1} parent=0
    #allocation2 [shape = 'u8[512]{0}', space=vmem, size = 0x400, scoped, tag = 'input window, operand 2, single buffered']
    #allocation3 [shape = 's32[1]{0}', space=sflag, size = 0x4, scoped, tag = 'scoped memory for tpu_custom_call.1']
    #allocation4 [shape = 's32[1]{0}', space=sflag, size = 0x4, scoped, tag = 'scoped memory for tpu_custom_call.1']
    #allocation5 [shape = 'u8[1024]{0}', space=vmem, size = 0x400, scoped, tag = 'output window, operand 0, single buffered']
    %10 = vsyncpa [#allocation3], 0
    %11 = vsyncpa [#allocation4], 0
    // Predicated region
    $region2: #{tpu_custom_call.1} parent=1 // pred_check
      _
    $region3: #{tpu_custom_call.1} parent=1 // pred_check_branch
      %13 = sbr.rel (0) target = $region5
    $region4: #{tpu_custom_call.1} parent=1 // pred_region
      _
    $region5: #{tpu_custom_call.1} parent=1 // pred_fallthru
      _
    // Predicated region
    $region6: #{tpu_custom_call.1} parent=1 // pred_check
      _
    $region7: #{tpu_custom_call.1} parent=1 // pred_check_branch
      %15 = sbr.rel (0) target = $region9
    $region8: #{tpu_custom_call.1} parent=1 // pred_region
      _
    $region9: #{tpu_custom_call.1} parent=1 // pred_fallthru
      _
    // Predicated region
    $region10: #{tpu_custom_call.1} parent=1 // pred_check
      _
    $region11: #{tpu_custom_call.1} parent=1 // pred_check_branch
      %17 = sbr.rel (0) target = $region13
    $region12: #{tpu_custom_call.1} parent=1 // pred_region
      %19 = vsyncadd [#allocation3], 0
      %s21 = sshll.u32 %s2, 4
      %s22 = int_to_ptr.hbm [resolvable:$true] %s21
      %s23 = sshll.u32 [#allocation2], 4
      %s24 = int_to_ptr.vmem [resolvable:$true] %s23
      %26 = dma.hbm_to_vmem [thread:$0]  %s22, 16, %s24, [#allocation3]
    $region13: #{tpu_custom_call.1} parent=1 // pred_fallthru
      _
    // Predicated region
    $region14: #{tpu_custom_call.1} parent=1 // pred_check
      _
    $region15: #{tpu_custom_call.1} parent=1 // pred_check_branch
      %28 = sbr.rel (0) target = $region17
    $region16: #{tpu_custom_call.1} parent=1 // pred_region
      _
    $region17: #{tpu_custom_call.1} parent=1 // pred_fallthru
      _
    // Predicated region
    $region18: #{tpu_custom_call.1} parent=1 // pred_check
      _
    $region19: #{tpu_custom_call.1} parent=1 // pred_check_branch
      %30 = sbr.rel (0) target = $region21
    $region20: #{tpu_custom_call.1} parent=1 // pred_region
      _
    $region21: #{tpu_custom_call.1} parent=1 // pred_fallthru
      _
    // Predicated region
    $region22: #{tpu_custom_call.1} parent=1 // pred_check
      _
    $region23: #{tpu_custom_call.1} parent=1 // pred_check_branch
      %32 = sbr.rel (0) target = $region25
    $region24: #{tpu_custom_call.1} parent=1 // pred_region
      %34 = dma.done [#allocation3], 16
    $region25: #{tpu_custom_call.1} parent=1 // pred_fallthru
      _
    %v35 = vld [vmem:[%s0] sm:$0xff]
    %v36 = vld [vmem:[%s0 + $0x8] sm:$0xff]
    %v37 = vld [vmem:[%s0 + $0x10] sm:$0xff]
    %v38 = vld [vmem:[%s0 + $0x18] sm:$0xff]
    %v39 = vld [vmem:[%s0 + $0x20] sm:$0xff]
    %v40 = vld [vmem:[%s0 + $0x28] sm:$0xff]
    %v41 = vld [vmem:[%s0 + $0x30] sm:$0xff]
    %v42 = vld [vmem:[%s0 + $0x38] sm:$0xff]
    %v43 = vld [vmem:[%s0 + $0x40] sm:$0xff]
    %v44 = vld [vmem:[%s0 + $0x48] sm:$0xff]
    %v45 = vld [vmem:[%s0 + $0x50] sm:$0xff]
    %v46 = vld [vmem:[%s0 + $0x58] sm:$0xff]
    %v47 = vld [vmem:[%s0 + $0x60] sm:$0xff]
    %v48 = vld [vmem:[%s0 + $0x68] sm:$0xff]
    %v49 = vld [vmem:[%s0 + $0x70] sm:$0xff]
    %v50 = vld [vmem:[%s0 + $0x78] sm:$0xff]
    %v51 = vld [vmem:[%s1] sm:$0xff]
    %v52 = vld [vmem:[%s1 + $0x8] sm:$0xff]
    %v53 = vld [vmem:[%s1 + $0x10] sm:$0xf]
    %v54 = vld [vmem:[#allocation2] sm:$0x1]
    %v56 = vperm.slane %v54, 0
    %vm58 = vcmask 162816
    %v60 = vsel %vm58, %v35, 0
    %v63 = vsel %vm58, %v36, 0
    %v66 = vsel %vm58, %v37, 0
    %v69 = vsel %vm58, %v38, 0
    %v72 = vsel %vm58, %v39, 0
    %v75 = vsel %vm58, %v40, 0
    %v78 = vsel %vm58, %v41, 0
    %v81 = vsel %vm58, %v42, 0
    %v84 = vsel %vm58, %v43, 0
    %v87 = vsel %vm58, %v44, 0
    %v90 = vsel %vm58, %v45, 0
    %v93 = vsel %vm58, %v46, 0
    %v96 = vsel %vm58, %v47, 0
    %v99 = vsel %vm58, %v48, 0
    %v102 = vsel %vm58, %v49, 0
    %v105 = vsel %vm58, %v50, 0
    %vm107 = vcmask 1043456
    %v109 = vsel %vm107, %v53, 0
    %111 = vmatpush.msra.mxu0 0.0
    %112 = vmatpush.msra.mxu0 0.0
    %113 = vmatpush.msra.mxu0 0.0
    %114 = vmatpush.msra.mxu0 0.0
    %115 = vmatpush.msra.mxu0 0.0
    %116 = vmatpush.msra.mxu0 0.0
    %117 = vmatpush.msra.mxu0 0.0
    %118 = vmatpush.msra.mxu0 0.0
    %119 = vmatpush.msra.mxu0 0.0
    %120 = vmatpush.msra.mxu0 0.0
    %121 = vmatpush.msra.mxu0 0.0
    %122 = vmatpush.msra.mxu0 0.0
    %123 = vmatpush.msra.mxu0 0.0
    %124 = vmatpush.msra.mxu0 %v109
    %125 = vmatpush.msra.mxu0 %v52
    %126 = vmatpush.msra.mxu0 %v51
    %127 = vmatmul.f32.gmra.mxu0 %v60
    %v128 = vpop.f32.mrf.mxu0
    %v129 = vadd.f32 %v56, %v128
    %130 = vmatmul.f32.gmra.mxu0 %v63
    %v131 = vpop.f32.mrf.mxu0
    %v132 = vadd.f32 %v56, %v131
    %133 = vmatmul.f32.gmra.mxu0 %v66
    %v134 = vpop.f32.mrf.mxu0
    %v135 = vadd.f32 %v56, %v134
    %136 = vmatmul.f32.gmra.mxu0 %v69
    %v137 = vpop.f32.mrf.mxu0
    %v138 = vadd.f32 %v56, %v137
    %139 = vmatmul.f32.gmra.mxu0 %v72
    %v140 = vpop.f32.mrf.mxu0
    %v141 = vadd.f32 %v56, %v140
    %142 = vmatmul.f32.gmra.mxu0 %v75
    %v143 = vpop.f32.mrf.mxu0
    %v144 = vadd.f32 %v56, %v143
    %145 = vmatmul.f32.gmra.mxu0 %v78
    %v146 = vpop.f32.mrf.mxu0
    %v147 = vadd.f32 %v56, %v146
    %148 = vmatmul.f32.gmra.mxu0 %v81
    %v149 = vpop.f32.mrf.mxu0
    %v150 = vadd.f32 %v56, %v149
    %151 = vmatmul.f32.gmra.mxu0 %v84
    %v152 = vpop.f32.mrf.mxu0
    %v153 = vadd.f32 %v56, %v152
    %154 = vmatmul.f32.gmra.mxu0 %v87
    %v155 = vpop.f32.mrf.mxu0
    %v156 = vadd.f32 %v56, %v155
    %157 = vmatmul.f32.gmra.mxu0 %v90
    %v158 = vpop.f32.mrf.mxu0
    %v159 = vadd.f32 %v56, %v158
    %160 = vmatmul.f32.gmra.mxu0 %v93
    %v161 = vpop.f32.mrf.mxu0
    %v162 = vadd.f32 %v56, %v161
    %163 = vmatmul.f32.gmra.mxu0 %v96
    %v164 = vpop.f32.mrf.mxu0
    %v165 = vadd.f32 %v56, %v164
    %166 = vmatmul.f32.gmra.mxu0 %v99
    %v167 = vpop.f32.mrf.mxu0
    %v168 = vadd.f32 %v56, %v167
    %169 = vmatmul.f32.gmra.mxu0 %v102
    %v170 = vpop.f32.mrf.mxu0
    %v171 = vadd.f32 %v56, %v170
    %172 = vmatmul.f32.gmra.mxu0 %v105
    %v173 = vpop.f32.mrf.mxu0
    %v174 = vadd.f32 %v56, %v173
    %175 = vdwg.mxu0
    %v176 = vmax.f32 %v129, 0.0
    %v177 = vmax.f32 %v132, 0.0
    %v178 = vmax.f32 %v135, 0.0
    %v179 = vmax.f32 %v138, 0.0
    %v180 = vmax.f32 %v141, 0.0
    %v181 = vmax.f32 %v144, 0.0
    %v182 = vmax.f32 %v147, 0.0
    %v183 = vmax.f32 %v150, 0.0
    %v184 = vmax.f32 %v153, 0.0
    %v185 = vmax.f32 %v156, 0.0
    %v186 = vmax.f32 %v159, 0.0
    %v187 = vmax.f32 %v162, 0.0
    %v188 = vmax.f32 %v165, 0.0
    %v189 = vmax.f32 %v168, 0.0
    %v190 = vmax.f32 %v171, 0.0
    %v191 = vmax.f32 %v174, 0.0
    %v192 = vld [vmem:[%s3] sm:$0xff]
    %v193 = vld [vmem:[%s3 + $0x8] sm:$0xff]
    %v194 = vld [vmem:[%s3 + $0x10] sm:$0x3]
    %v195 = vld [vmem:[%s4] sm:$0x1]
    %v197 = vperm.slane %v195, 0
    %vm199 = vcmask 146432
    %v201 = vsel %vm199, %v176, 0
    %v204 = vsel %vm199, %v177, 0
    %v207 = vsel %vm199, %v178, 0
    %v210 = vsel %vm199, %v179, 0
    %v213 = vsel %vm199, %v180, 0
    %v216 = vsel %vm199, %v181, 0
    %v219 = vsel %vm199, %v182, 0
    %v222 = vsel %vm199, %v183, 0
    %v225 = vsel %vm199, %v184, 0
    %v228 = vsel %vm199, %v185, 0
    %v231 = vsel %vm199, %v186, 0
    %v234 = vsel %vm199, %v187, 0
    %v237 = vsel %vm199, %v188, 0
    %v240 = vsel %vm199, %v189, 0
    %v243 = vsel %vm199, %v190, 0
    %v246 = vsel %vm199, %v191, 0
    %vm248 = vcmask 1041408
    %v250 = vsel %vm248, %v194, 0
    %252 = vmatpush.msra.mxu0 0.0
    %253 = vmatpush.msra.mxu0 0.0
    %254 = vmatpush.msra.mxu0 0.0
    %255 = vmatpush.msra.mxu0 0.0
    %256 = vmatpush.msra.mxu0 0.0
    %257 = vmatpush.msra.mxu0 0.0
    %258 = vmatpush.msra.mxu0 0.0
    %259 = vmatpush.msra.mxu0 0.0
    %260 = vmatpush.msra.mxu0 0.0
    %261 = vmatpush.msra.mxu0 0.0
    %262 = vmatpush.msra.mxu0 0.0
    %263 = vmatpush.msra.mxu0 0.0
    %264 = vmatpush.msra.mxu0 0.0
    %265 = vmatpush.msra.mxu0 %v250
    %266 = vmatpush.msra.mxu0 %v193
    %267 = vmatpush.msra.mxu0 %v192
    %268 = vmatmul.f32.gmra.mxu0 %v201
    %v269 = vpop.f32.mrf.mxu0
    %v270 = vadd.f32 %v197, %v269
    %271 = vmatmul.f32.gmra.mxu0 %v204
    %v272 = vpop.f32.mrf.mxu0
    %v273 = vadd.f32 %v197, %v272
    %274 = vmatmul.f32.gmra.mxu0 %v207
    %v275 = vpop.f32.mrf.mxu0
    %v276 = vadd.f32 %v197, %v275
    %277 = vmatmul.f32.gmra.mxu0 %v210
    %v278 = vpop.f32.mrf.mxu0
    %v279 = vadd.f32 %v197, %v278
    %280 = vmatmul.f32.gmra.mxu0 %v213
    %v281 = vpop.f32.mrf.mxu0
    %v282 = vadd.f32 %v197, %v281
    %283 = vmatmul.f32.gmra.mxu0 %v216
    %v284 = vpop.f32.mrf.mxu0
    %v285 = vadd.f32 %v197, %v284
    %286 = vmatmul.f32.gmra.mxu0 %v219
    %v287 = vpop.f32.mrf.mxu0
    %v288 = vadd.f32 %v197, %v287
    %289 = vmatmul.f32.gmra.mxu0 %v222
    %v290 = vpop.f32.mrf.mxu0
    %v291 = vadd.f32 %v197, %v290
    %292 = vmatmul.f32.gmra.mxu0 %v225
    %v293 = vpop.f32.mrf.mxu0
    %v294 = vadd.f32 %v197, %v293
    %295 = vmatmul.f32.gmra.mxu0 %v228
    %v296 = vpop.f32.mrf.mxu0
    %v297 = vadd.f32 %v197, %v296
    %298 = vmatmul.f32.gmra.mxu0 %v231
    %v299 = vpop.f32.mrf.mxu0
    %v300 = vadd.f32 %v197, %v299
    %301 = vmatmul.f32.gmra.mxu0 %v234
    %v302 = vpop.f32.mrf.mxu0
    %v303 = vadd.f32 %v197, %v302
    %304 = vmatmul.f32.gmra.mxu0 %v237
    %v305 = vpop.f32.mrf.mxu0
    %v306 = vadd.f32 %v197, %v305
    %307 = vmatmul.f32.gmra.mxu0 %v240
    %v308 = vpop.f32.mrf.mxu0
    %v309 = vadd.f32 %v197, %v308
    %310 = vmatmul.f32.gmra.mxu0 %v243
    %v311 = vpop.f32.mrf.mxu0
    %v312 = vadd.f32 %v197, %v311
    %313 = vmatmul.f32.gmra.mxu0 %v246
    %v314 = vpop.f32.mrf.mxu0
    %v315 = vadd.f32 %v197, %v314
    %316 = vdwg.mxu0
    %317 = vxpose.xlu0.b32.start [1/16] %v270, 128
    %318 = vxpose.xlu0.b32.cont [2/16] %v273, 128
    %319 = vxpose.xlu0.b32.cont [3/16] %v276, 128
    %320 = vxpose.xlu0.b32.cont [4/16] %v279, 128
    %321 = vxpose.xlu0.b32.cont [5/16] %v282, 128
    %322 = vxpose.xlu0.b32.cont [6/16] %v285, 128
    %323 = vxpose.xlu0.b32.cont [7/16] %v288, 128
    %324 = vxpose.xlu0.b32.cont [8/16] %v291, 128
    %325 = vxpose.xlu0.b32.cont [9/16] %v294, 128
    %326 = vxpose.xlu0.b32.cont [10/16] %v297, 128
    %327 = vxpose.xlu0.b32.cont [11/16] %v300, 128
    %328 = vxpose.xlu0.b32.cont [12/16] %v303, 128
    %329 = vxpose.xlu0.b32.cont [13/16] %v306, 128
    %330 = vxpose.xlu0.b32.cont [14/16] %v309, 128
    %331 = vxpose.xlu0.b32.cont [15/16] %v312, 128
    %332 = vxpose.xlu0.b32.end [16/16] %v315, 128
    %v333 = vpop.trf.xlu0
    %v334 = vpop.trf.xlu0
    %v335 = vpop.trf.xlu0
    %v336 = vpop.trf.xlu0
    %v337 = vpop.trf.xlu0
    %v338 = vpop.trf.xlu0
    %v339 = vpop.trf.xlu0
    %v340 = vpop.trf.xlu0
    %v341 = vpop.trf.xlu0
    %v342 = vpop.trf.xlu0
    %v343 = vpop.trf.xlu0
    %v344 = vpop.trf.xlu0
    %v345 = vpop.trf.xlu0
    %v346 = vpop.trf.xlu0
    %v347 = vpop.trf.xlu0
    %v348 = vpop.trf.xlu0
    %349 = vst [vmem:[#allocation5] sm:$0x3] %v333
    // Predicated region
    $region26: #{tpu_custom_call.1} parent=1 // pred_check
      _
    $region27: #{tpu_custom_call.1} parent=1 // pred_check_branch
      %351 = sbr.rel (0) target = $region29
    $region28: #{tpu_custom_call.1} parent=1 // pred_region
      %353 = vsyncadd [#allocation4], 0
      %s355 = sshll.u32 [#allocation5], 4
      %s356 = int_to_ptr.vmem [resolvable:$true] %s355
      %s357 = sshll.u32 %s5, 4
      %s358 = int_to_ptr.hbm [resolvable:$true] %s357
      %360 = dma.vmem_to_hbm [thread:$0]  %s356, 32, %s358, [#allocation4]
    $region29: #{tpu_custom_call.1} parent=1 // pred_fallthru
      _
    // Predicated region
    $region30: #{tpu_custom_call.1} parent=1 // pred_check
      _
    $region31: #{tpu_custom_call.1} parent=1 // pred_check_branch
      %362 = sbr.rel (0) target = $region33
    $region32: #{tpu_custom_call.1} parent=1 // pred_region
      %364 = dma.done [#allocation4], 32
    $region33: #{tpu_custom_call.1} parent=1 // pred_fallthru
      _
    %365 = vsyncpa [#allocation3], 1
    %366 = vsyncpa [#allocation4], 1

</llo_original>
